<compile_context>
chip_gen: v5e
topology: v5e:2x2
jax: 0.10.0
libtpu: 0.0.40
codegen_flags: <defaults>
</compile_context>

<pallas_src>
import functools
import math

import jax
import jax.numpy as jnp
from jax.experimental import pallas as pl
from jax.experimental.pallas import tpu as pltpu


def _round_up(x, m):
    return ((x + m - 1) // m) * m


def _vmem_capacity_bytes():
    try:
        cap = int(pltpu.get_tpu_info().vmem_capacity_bytes)
        if cap > 0:
            return cap
    except Exception:
        pass
    return 64 * 1024 * 1024  # conservative (v7x per-core VMEM)


# ----------------------------- kernel bodies --------------------------------

def _gcn_small_kernel(*refs, has_bias, compute_dtype):
    """Whole-graph-per-batch fused kernel: out[b] = adj[b] @ (x[b] @ W) (+ b)."""
    if has_bias:
        x_ref, w_ref, adj_ref, b_ref, o_ref = refs
    else:
        x_ref, w_ref, adj_ref, o_ref = refs
        b_ref = None
    support = jnp.dot(x_ref[...].astype(compute_dtype),
                      w_ref[...].astype(compute_dtype),
                      preferred_element_type=jnp.float32)
    acc = jnp.dot(adj_ref[...].astype(compute_dtype),
                  support.astype(compute_dtype),
                  preferred_element_type=jnp.float32)
    if b_ref is not None:
        acc = acc + b_ref[...].astype(jnp.float32)
    o_ref[...] = acc.astype(o_ref.dtype)


def _gcn_tile_kernel(*refs, has_bias, compute_dtype):
    """Fused tiled kernel, grid = (B, Fout_tiles, row_tiles).

    support[b][:, j-tile] = x[b] @ W[:, j-tile] is computed once per (b, j)
    under @pl.when(i == 0) into a resident VMEM scratch and reused for every
    adjacency row stripe i. adj/x/W arrive as f32 and are cast in-kernel.
    """
    if has_bias:
        x_ref, w_ref, adj_ref, b_ref, o_ref, sup_ref = refs
    else:
        x_ref, w_ref, adj_ref, o_ref, sup_ref = refs
        b_ref = None

    i = pl.program_id(2)

    @pl.when(i == 0)
    def _compute_support():
        sup_ref[...] = jnp.dot(
            x_ref[...].astype(compute_dtype),
            w_ref[...].astype(compute_dtype),
            preferred_element_type=jnp.float32,
        ).astype(sup_ref.dtype)

    acc = jnp.dot(adj_ref[...].astype(compute_dtype), sup_ref[...],
                  preferred_element_type=jnp.float32)
    if b_ref is not None:
        acc = acc + b_ref[...].astype(jnp.float32)
    o_ref[...] = acc.astype(o_ref.dtype)


# -------------------------------- wrapper ------------------------------------

def graph_convolution(x, adj, weight, bias=None, *,
                      compute_dtype=jnp.bfloat16, tile_m=None, tile_f=None):
    """Pallas implementation of GraphConvolution.forward.

    x:      (B, N, Fin)  float32
    adj:    (B, N, N)    float32
    weight: (Fin, Fout)  float32
    bias:   (1, 1, Fout) float32 or None
    returns (B, N, Fout) with x.dtype
    """
    B, N, Fin = x.shape
    Fin_w, Fout = weight.shape
    assert Fin_w == Fin
    assert adj.shape == (B, N, N)
    out_dtype = x.dtype
    out_isz = jnp.dtype(out_dtype).itemsize
    sup_isz = jnp.dtype(compute_dtype).itemsize

    bias2d = None
    if bias is not None:
        bias2d = jnp.reshape(bias, (1, Fout)).astype(jnp.float32)
    has_bias = bias2d is not None

    vmem_cap = _vmem_capacity_bytes()
    budget = int(vmem_cap * 0.7)

    # ---- small-graph fast path: one grid step per batch element, no padding -
    small_est = (2 * 4 * (N * N + N * Fin + Fin * Fout + Fout)
                 + 2 * N * Fout * out_isz)
    use_fast = (tile_m is None and tile_f is None
                and small_est <= min(budget, 16 * 1024 * 1024))
    if use_fast:
        kernel = functools.partial(_gcn_small_kernel, has_bias=has_bias,
                                   compute_dtype=compute_dtype)
        in_specs = [
            pl.BlockSpec((pl.Squeezed(), N, Fin), lambda b: (b, 0, 0)),
            pl.BlockSpec((Fin, Fout), lambda b: (0, 0)),
            pl.BlockSpec((pl.Squeezed(), N, N), lambda b: (b, 0, 0)),
        ]
        args = [x, weight, adj]
        if has_bias:
            in_specs.append(pl.BlockSpec((1, Fout), lambda b: (0, 0)))
            args.append(bias2d)
        vmem_limit = int(min(max(2 * small_est, 32 * 2 ** 20),
                             int(vmem_cap * 0.9)))
        return pl.pallas_call(
            kernel,
            grid=(B,),
            in_specs=in_specs,
            out_specs=pl.BlockSpec((pl.Squeezed(), N, Fout), lambda b: (b, 0, 0)),
            out_shape=jax.ShapeDtypeStruct((B, N, Fout), out_dtype),
            compiler_params=pltpu.CompilerParams(
                dimension_semantics=("parallel",),
                vmem_limit_bytes=vmem_limit),
        )(*args)

    # ---- general path: support resident per (batch, Fout-tile) -------------
    def est(tm, tf):
        return (2 * tm * N * 4            # adj f32 row stripes, double-buffered
                + 2 * N * Fin * 4         # x[b] (DMA'd once per batch)
                + 2 * Fin * tf * 4        # weight tile
                + 2 * tf * 4              # bias tile
                + 2 * tm * tf * out_isz   # output tiles
                + N * tf * sup_isz)       # resident support scratch

    if tile_f is not None:
        tf_cands = [tile_f]
    else:
        tf_cands = [Fout] + [t for t in (1024, 512, 256, 128) if t < Fout]
    if tile_m is not None:
        tm_cands = [tile_m]
    else:
        tm_cands = sorted({min(t, _round_up(N, 8)) for t in (512, 256, 128)},
                          reverse=True)

    choice = None
    for tf in tf_cands:
        for tm in tm_cands:
            if est(tm, tf) <= budget:
                choice = (tm, tf)
                break
        if choice is not None:
            break
    if choice is None:
        # TODO(synk): add a K-tiled (streamed-support) fallback for shapes whose
        # per-batch adj row stripe / support footprint exceeds VMEM.
        choice = (tm_cands[-1], tf_cands[-1])
    TM, TF = choice
    NI = pl.cdiv(N, TM)
    NF = pl.cdiv(Fout, TF)

    kernel = functools.partial(_gcn_tile_kernel, has_bias=has_bias,
                               compute_dtype=compute_dtype)
    in_specs = [
        pl.BlockSpec((pl.Squeezed(), N, Fin), lambda b, j, i: (b, 0, 0)),
        pl.BlockSpec((Fin, TF), lambda b, j, i: (0, j)),
        pl.BlockSpec((pl.Squeezed(), TM, N), lambda b, j, i: (b, i, 0)),
    ]
    args = [x, weight, adj]
    if has_bias:
        in_specs.append(pl.BlockSpec((1, TF), lambda b, j, i: (0, j)))
        args.append(bias2d)

    vmem_limit = int(min(max(int(1.5 * est(TM, TF)), 32 * 2 ** 20),
                         int(vmem_cap * 0.9)))
    return pl.pallas_call(
        kernel,
        grid=(B, NF, NI),
        in_specs=in_specs,
        out_specs=pl.BlockSpec((pl.Squeezed(), TM, TF), lambda b, j, i: (b, i, j)),
        out_shape=jax.ShapeDtypeStruct((B, N, Fout), out_dtype),
        scratch_shapes=[pltpu.VMEM((N, TF), compute_dtype)],
        compiler_params=pltpu.CompilerParams(
            dimension_semantics=("parallel", "parallel", "arbitrary"),
            vmem_limit_bytes=vmem_limit),
    )(*args)


# ---------------------------------- test -------------------------------------

if __name__ == "__main__":
    key = jax.random.PRNGKey(0)
    k_x, k_adj, k_w, k_b, k_x2, k_adj2 = jax.random.split(key, 6)

    def ref(x_, adj_, w_, b_=None):
        sup = jnp.matmul(x_, w_, precision=jax.lax.Precision.HIGHEST)
        out = jnp.matmul(adj_, sup, precision=jax.lax.Precision.HIGHEST)
        return out if b_ is None else out + b_

    # ---- small-graph case (fast path, matches the GCN layer usage) ---------
    B, N, Fin, Fout = 2, 16, 32, 64
    x = jax.random.normal(k_x, (B, N, Fin), dtype=jnp.float32)
    adj = jax.random.uniform(k_adj, (B, N, N), dtype=jnp.float32)
    stdv = 1.0 / math.sqrt(Fout)
    weight = jax.random.uniform(k_w, (Fin, Fout), dtype=jnp.float32,
                                minval=-stdv, maxval=stdv)
    bias = jax.random.uniform(k_b, (1, 1, Fout), dtype=jnp.float32,
                              minval=-stdv, maxval=stdv)

    out = jax.block_until_ready(
        graph_convolution(x, adj, weight, bias=None, compute_dtype=jnp.float32))
    assert out.shape == (B, N, Fout) and out.dtype == x.dtype
    assert jnp.allclose(out, ref(x, adj, weight), atol=1e-3, rtol=1e-3)

    out_b = jax.block_until_ready(
        graph_convolution(x, adj, weight, bias=bias, compute_dtype=jnp.float32))
    assert jnp.allclose(out_b, ref(x, adj, weight, bias), atol=1e-3, rtol=1e-3)

    out_bf = jax.block_until_ready(graph_convolution(x, adj, weight, bias=bias))
    assert jnp.allclose(out_bf, ref(x, adj, weight, bias), atol=1e-1, rtol=5e-2)

    # ---- larger case exercising the tiled general path (tile_m forces it) ---
    B2, N2, Fin2, Fout2 = 2, 256, 32, 128
    x2 = jax.random.normal(k_x2, (B2, N2, Fin2), dtype=jnp.float32)
    adj2 = jax.random.uniform(k_adj2, (B2, N2, N2), dtype=jnp.float32)
    w2 = jax.random.uniform(k_w, (Fin2, Fout2), dtype=jnp.float32,
                            minval=-stdv, maxval=stdv)
    b2 = jax.random.uniform(k_b, (1, 1, Fout2), dtype=jnp.float32,
                            minval=-stdv, maxval=stdv)

    out2 = jax.block_until_ready(
        graph_convolution(x2, adj2, w2, bias=None,
                          compute_dtype=jnp.float32, tile_m=128))
    assert jnp.allclose(out2, ref(x2, adj2, w2), atol=1e-3, rtol=1e-3)

    out2_b = jax.block_until_ready(
        graph_convolution(x2, adj2, w2, bias=b2,
                          compute_dtype=jnp.float32, tile_m=128))
    assert jnp.allclose(out2_b, ref(x2, adj2, w2, b2), atol=1e-3, rtol=1e-3)

    out2_bf = jax.block_until_ready(
        graph_convolution(x2, adj2, w2, bias=b2, tile_m=128))
    assert jnp.allclose(out2_bf, ref(x2, adj2, w2, b2), atol=5e-1, rtol=5e-2)

    print("KERNEL_OK")
</pallas_src>

<mosaic_0001>
module attributes {stable_mosaic.version = 11 : i64} {
  func.func @_gcn_small_kernel(%arg0: i32, %arg1: memref<1x16x32xf32, #tpu.memory_space<vmem>>, %arg2: memref<32x64xf32, #tpu.memory_space<vmem>>, %arg3: memref<1x16x16xf32, #tpu.memory_space<vmem>>, %arg4: memref<1x16x64xf32, #tpu.memory_space<vmem>>) attributes {dimension_semantics = [#tpu.dimension_semantics<parallel>], iteration_bounds = array<i64: 2>, scalar_prefetch = 0 : i64, scratch_operands = 0 : i64, tpu.core_type = #tpu.core_type<tc>, window_params = [{transform_indices = @transform_0, window_bounds = array<i64: 1, 16, 32>}, {pipeline_mode = #tpu.pipeline_mode<synchronous>, transform_indices = @transform_1, window_bounds = array<i64: 32, 64>}, {transform_indices = @transform_2, window_bounds = array<i64: 1, 16, 16>}, {transform_indices = @transform_3, window_bounds = array<i64: 1, 16, 64>}]} {
    %c0 = arith.constant 0 : index
    %c0_0 = arith.constant 0 : index
    %c0_1 = arith.constant 0 : index
    %0 = vector.load %arg1[%c0, %c0_0, %c0_1] : memref<1x16x32xf32, #tpu.memory_space<vmem>>, vector<1x16x32xf32>
    %1 = vector.shape_cast %0 : vector<1x16x32xf32> to vector<16x32xf32>
    %c0_2 = arith.constant 0 : index
    %c0_3 = arith.constant 0 : index
    %2 = vector.load %arg2[%c0_2, %c0_3] : memref<32x64xf32, #tpu.memory_space<vmem>>, vector<32x64xf32>
    %cst = arith.constant dense<0.000000e+00> : vector<16x64xf32>
    %3 = tpu.matmul %1, %2, %cst {dimension_numbers = #tpu.dot_dimension_numbers<[1], [0], [0], [1], [0, 0, 1, 1], [], []>} : vector<16x32xf32>, vector<32x64xf32>, vector<16x64xf32> -> vector<16x64xf32>
    %c0_4 = arith.constant 0 : index
    %c0_5 = arith.constant 0 : index
    %c0_6 = arith.constant 0 : index
    %4 = vector.load %arg3[%c0_4, %c0_5, %c0_6] : memref<1x16x16xf32, #tpu.memory_space<vmem>>, vector<1x16x16xf32>
    %5 = vector.shape_cast %4 : vector<1x16x16xf32> to vector<16x16xf32>
    %cst_7 = arith.constant dense<0.000000e+00> : vector<16x64xf32>
    %6 = tpu.matmul %5, %3, %cst_7 {dimension_numbers = #tpu.dot_dimension_numbers<[1], [0], [0], [1], [0, 0, 1, 1], [], []>} : vector<16x16xf32>, vector<16x64xf32>, vector<16x64xf32> -> vector<16x64xf32>
    %c0_8 = arith.constant 0 : index
    %c0_9 = arith.constant 0 : index
    %c0_10 = arith.constant 0 : index
    %7 = vector.load %arg4[%c0_8, %c0_9, %c0_10] : memref<1x16x64xf32, #tpu.memory_space<vmem>>, vector<1x16x64xf32>
    %8 = vector.shape_cast %7 : vector<1x16x64xf32> to vector<16x64xf32>
    %9 = vector.shape_cast %6 : vector<16x64xf32> to vector<1x16x64xf32>
    tpu.vector_store %arg4[%c0_8, %c0_9, %c0_10], %9 {strides = array<i32>} : memref<1x16x64xf32, #tpu.memory_space<vmem>>, vector<1x16x64xf32>,
    return
  }
  func.func @transform_0(%arg0: i32) -> (i32, i32, i32) {
    %c0_i32 = arith.constant 0 : i32
    %c0_i32_0 = arith.constant 0 : i32
    %c0_i32_1 = arith.constant 0 : i32
    return %arg0, %c0_i32, %c0_i32_0 : i32, i32, i32
  }
  func.func @transform_1(%arg0: i32) -> (i32, i32) {
    %c0_i32 = arith.constant 0 : i32
    %c0_i32_0 = arith.constant 0 : i32
    %c0_i32_1 = arith.constant 0 : i32
    return %c0_i32, %c0_i32_0 : i32, i32
  }
  func.func @transform_2(%arg0: i32) -> (i32, i32, i32) {
    %c0_i32 = arith.constant 0 : i32
    %c0_i32_0 = arith.constant 0 : i32
    %c0_i32_1 = arith.constant 0 : i32
    return %arg0, %c0_i32, %c0_i32_0 : i32, i32, i32
  }
  func.func @transform_3(%arg0: i32) -> (i32, i32, i32) {
    %c0_i32 = arith.constant 0 : i32
    %c0_i32_0 = arith.constant 0 : i32
    %c0_i32_1 = arith.constant 0 : i32
    return %arg0, %c0_i32, %c0_i32_0 : i32, i32, i32
  }
}

</mosaic_0001>

<llo_original>
// kernel: tpu_custom_call.1
$region0: #{tpu_custom_call.1}
  #allocation0 [shape = 'u32[]', space=smem, size = 0x4, offset = 0x4, fixed_abs, tag = 'smem constant byte address 0x4 - core index']
  #allocation1 [shape = 'u32[72,128]{1,0:T(1,128)}', space=vmem, size = 0x9000, scoped, tag = 'internal scratch']
  %s0 = inlined_call_operand.hbm [shape: f32[2,16,32], index: 0, kind: input, shape index: {}]
  %s1 = inlined_call_operand.hbm [shape: f32[32,64], index: 1, kind: input, shape index: {}]
  %s2 = inlined_call_operand.hbm [shape: f32[2,16,16], index: 2, kind: input, shape index: {}]
  %s3 = inlined_call_operand.hbm [shape: f32[2,16,64], index: 3, kind: output, shape index: {}]
  %s4 = sld [smem:[#allocation0]]
  $region57: #{tpu_custom_call.1} parent=0
    _
  %s6 = ssub.s32 1, %s4
  %s7 = scalar_select 0, %s6, %s4
  $region1: #{tpu_custom_call.1} parent=0
    #allocation2 [shape = 'u8[16384]{0}', space=vmem, size = 0x4000, scoped, tag = 'input window, operand 0']
    #allocation3 [shape = 's32[2]{0}', space=sflag, size = 0x8, scoped, tag = 'scoped memory for tpu_custom_call.1']
    #allocation4 [shape = 's32[2]{0}', space=sflag, size = 0x8, scoped, tag = 'scoped memory for tpu_custom_call.1']
    #allocation5 [shape = 'u8[16384]{0}', space=vmem, size = 0x4000, scoped, tag = 'input window, operand 1, single buffered']
    #allocation6 [shape = 's32[1]{0}', space=sflag, size = 0x4, scoped, tag = 'scoped memory for tpu_custom_call.1']
    #allocation7 [shape = 'u8[16384]{0}', space=vmem, size = 0x4000, scoped, tag = 'input window, operand 2']
    #allocation8 [shape = 'u8[16384]{0}', space=vmem, size = 0x4000, scoped, tag = 'output window, operand 0']
    %8 = vsyncpa [#allocation3], 0
    %s9 = scalar_lea.sflag [#allocation3], 1
    %10 = vsyncpa %s9, 0
    %11 = vsyncpa [#allocation6], 0
    %12 = vsyncpa [#allocation4], 0
    %s13 = scalar_lea.sflag [#allocation4], 1
    %14 = vsyncpa %s13, 0
    loop: start=0, step=1, limit=4
    $region2: #{tpu_custom_call.1} parent=1 // loop_pre_header
      _
    $region3: #{tpu_custom_call.1} parent=1 // loop_header
      %s16 = sphi 0, %s20
      %p17 = scmp.ge.s32.totalorder %s16, 4
      %s26 = sphi 0, %s28
      %s29 = sphi 0, %s26
      %s30 = sphi 0, %s29
      %s46 = sphi 0, %s30
      %s50 = sphi 0, %s50
      %s52 = sphi 0, %s50
      %s53 = sphi 0, %s52
      %s67 = sphi 0, %s53
      %s73 = sphi 0, %s75
      %s76 = sphi 0, %s73
      %s77 = sphi 0, %s76
      %s93 = sphi 0, %s77
      %s99 = sphi 0, %s101
      %s102 = sphi 0, %s99
      %s103 = sphi 0, %s102
      %s119 = sphi 0, %s103
    $region4: #{tpu_custom_call.1} parent=1 // loop_header_branch
      %19 = sbr.rel (%p17) target = $region8
    $region5: #{tpu_custom_call.1} parent=1 // loop_body
      %s21 = ssub.s32 %s16, 1
      %s22 = ssub.s32 %s16, 2
      %s23 = sadd.s32 %s16, 1
      %s24 = ssub.s32 %s16, %s23
      %p25 = scmp.eq.s32.totalorder %s24, 0
      %s27 = sadd.s32 %s26, 1
      %s28 = scalar_select %p25, %s26, %s27
      %p31 = pneg %p25
      %p32 = scmp.eq.s32.totalorder %s16, 1
      %p33 = por %p31, %p32
      %p34 = scmp.ne.s32.totalorder %s26, %s29
      %p35 = scmp.eq.s32.totalorder %s16, 0
      %p36 = por %p34, %p35
      %p37 = scmp.ne.s32.totalorder %s26, %s29
      %p38 = scmp.eq.s32.totalorder %s21, 1
      %p39 = por %p37, %p38
      %p40 = scmp.ne.s32.totalorder %s29, %s30
      %p41 = scmp.eq.s32.totalorder %s21, 0
      %p42 = por %p40, %p41
      %p43 = scmp.ne.s32.totalorder %s29, %s30
      %p44 = scmp.eq.s32.totalorder %s22, 1
      %p45 = por %p43, %p44
      %p47 = scmp.ne.s32.totalorder %s30, %s46
      %p48 = scmp.eq.s32.totalorder %s22, 0
      %p49 = por %p47, %p48
      %s51 = sadd.s32 %s50, 1
      %p54 = scmp.eq.s32.totalorder %s16, 1
      %p55 = scmp.ne.s32.totalorder %s50, %s52
      %p56 = scmp.eq.s32.totalorder %s16, 0
      %p57 = por %p55, %p56
      %p58 = scmp.ne.s32.totalorder %s50, %s52
      %p59 = scmp.eq.s32.totalorder %s21, 1
      %p60 = por %p58, %p59
      %p61 = scmp.ne.s32.totalorder %s52, %s53
      %p62 = scmp.eq.s32.totalorder %s21, 0
      %p63 = por %p61, %p62
      %p64 = scmp.ne.s32.totalorder %s52, %s53
      %p65 = scmp.eq.s32.totalorder %s22, 1
      %p66 = por %p64, %p65
      %p68 = scmp.ne.s32.totalorder %s53, %s67
      %p69 = scmp.eq.s32.totalorder %s22, 0
      %p70 = por %p68, %p69
      %s71 = ssub.s32 %s16, %s23
      %p72 = scmp.eq.s32.totalorder %s71, 0
      %s74 = sadd.s32 %s73, 1
      %s75 = scalar_select %p72, %s73, %s74
      %p78 = pneg %p72
      %p79 = scmp.eq.s32.totalorder %s16, 1
      %p80 = por %p78, %p79
      %p81 = scmp.ne.s32.totalorder %s73, %s76
      %p82 = scmp.eq.s32.totalorder %s16, 0
      %p83 = por %p81, %p82
      %p84 = scmp.ne.s32.totalorder %s73, %s76
      %p85 = scmp.eq.s32.totalorder %s21, 1
      %p86 = por %p84, %p85
      %p87 = scmp.ne.s32.totalorder %s76, %s77
      %p88 = scmp.eq.s32.totalorder %s21, 0
      %p89 = por %p87, %p88
      %p90 = scmp.ne.s32.totalorder %s76, %s77
      %p91 = scmp.eq.s32.totalorder %s22, 1
      %p92 = por %p90, %p91
      %p94 = scmp.ne.s32.totalorder %s77, %s93
      %p95 = scmp.eq.s32.totalorder %s22, 0
      %p96 = por %p94, %p95
      %s97 = ssub.s32 %s16, %s23
      %p98 = scmp.eq.s32.totalorder %s97, 0
      %s100 = sadd.s32 %s99, 1
      %s101 = scalar_select %p98, %s99, %s100
      %p104 = pneg %p98
      %p105 = scmp.eq.s32.totalorder %s16, 1
      %p106 = por %p104, %p105
      %p107 = scmp.ne.s32.totalorder %s99, %s102
      %p108 = scmp.eq.s32.totalorder %s16, 0
      %p109 = por %p107, %p108
      %p110 = scmp.ne.s32.totalorder %s99, %s102
      %p111 = scmp.eq.s32.totalorder %s21, 1
      %p112 = por %p110, %p111
      %p113 = scmp.ne.s32.totalorder %s102, %s103
      %p114 = scmp.eq.s32.totalorder %s21, 0
      %p115 = por %p113, %p114
      %p116 = scmp.ne.s32.totalorder %s102, %s103
      %p117 = scmp.eq.s32.totalorder %s22, 1
      %p118 = por %p116, %p117
      %p120 = scmp.ne.s32.totalorder %s103, %s119
      %p121 = scmp.eq.s32.totalorder %s22, 0
      %p122 = por %p120, %p121
      %p123 = scmp.le.s32.totalorder 1, %s16
      %p124 = scmp.lt.s32.totalorder %s16, 3
      %p125 = pnand %p123, %p124
      %p126 = pneg %p125
      // Predicated region
      $region9: #{tpu_custom_call.1} parent=5 // pred_check
        _
      $region10: #{tpu_custom_call.1} parent=5 // pred_check_branch
        %128 = sbr.rel (%p125) target = $region12
      $region11: #{tpu_custom_call.1} parent=5 // pred_region
        %s129 = ssub.s32 %s16, 1
        // Predicated region
        $region13: #{tpu_custom_call.1} parent=11 // pred_check
          %p130 = pneg %p63
        $region14: #{tpu_custom_call.1} parent=11 // pred_check_branch
          %132 = sbr.rel (%p130) target = $region16
        $region15: #{tpu_custom_call.1} parent=11 // pred_region
          %134 = vsyncadd [#allocation6], 0
          %s135 = sshll.u32 %s1, 4
          %s136 = int_to_ptr.hbm [resolvable:$true] %s135
          %s137 = sshll.u32 [#allocation5], 4
          %s138 = int_to_ptr.vmem [resolvable:$true] %s137
          %143 = dma.hbm_to_vmem [thread:$0]  %s136, 512, %s138, [#allocation6], 128, 128, 8
        $region16: #{tpu_custom_call.1} parent=11 // pred_fallthru
          _
      $region12: #{tpu_custom_call.1} parent=5 // pred_fallthru
        _
      %p144 = scmp.lt.s32.totalorder %s16, 2
      // Predicated region
      $region17: #{tpu_custom_call.1} parent=5 // pred_check
        %p145 = pneg %p144
      $region18: #{tpu_custom_call.1} parent=5 // pred_check_branch
        %147 = sbr.rel (%p145) target = $region20
      $region19: #{tpu_custom_call.1} parent=5 // pred_region
        // Predicated region
        $region21: #{tpu_custom_call.1} parent=19 // pred_check
          %p148 = pneg %p36
        $region22: #{tpu_custom_call.1} parent=19 // pred_check_branch
          %150 = sbr.rel (%p148) target = $region24
        $region23: #{tpu_custom_call.1} parent=19 // pred_region
          %s151 = sand.u32 %s16, 1
          %s152 = scalar_lea.sflag [#allocation3], %s151
          %s153 = sand.u32 %s26, 1
          %s154 = smul.addr %s153, 16
          %s155 = scalar_lea.vmem [#allocation2], %s154
          %157 = vsyncadd %s152, 0
          %s158 = smul.addr %s16, 2
          %s159 = smul.addr %s158, 8
          %s160 = scalar_lea.hbm %s0, %s159
          %s161 = sshll.u32 %s160, 4
          %s162 = int_to_ptr.hbm [resolvable:$true] %s161
          %s163 = sshll.u32 %s155, 4
          %s164 = int_to_ptr.vmem [resolvable:$true] %s163
          %169 = dma.hbm_to_vmem [thread:$0]  %s162, 256, %s164, %s152, 128, 128, 8
        $region24: #{tpu_custom_call.1} parent=19 // pred_fallthru
          _
        // Predicated region
        $region25: #{tpu_custom_call.1} parent=19 // pred_check
          %p170 = pneg %p83
        $region26: #{tpu_custom_call.1} parent=19 // pred_check_branch
          %172 = sbr.rel (%p170) target = $region28
        $region27: #{tpu_custom_call.1} parent=19 // pred_region
          %s173 = sand.u32 %s16, 1
          %s174 = scalar_lea.sflag [#allocation3], %s173
          %s175 = sand.u32 %s73, 1
          %s176 = smul.addr %s175, 16
          %s177 = scalar_lea.vmem [#allocation7], %s176
          %179 = vsyncadd %s174, 0
          %s180 = smul.addr %s16, 2
          %s181 = smul.addr %s180, 8
          %s182 = scalar_lea.hbm %s2, %s181
          %s183 = sshll.u32 %s182, 4
          %s184 = int_to_ptr.hbm [resolvable:$true] %s183
          %s185 = sshll.u32 %s177, 4
          %s186 = int_to_ptr.vmem [resolvable:$true] %s185
          %191 = dma.hbm_to_vmem [thread:$0]  %s184, 256, %s186, %s174, 128, 128, 8
        $region28: #{tpu_custom_call.1} parent=19 // pred_fallthru
          _
      $region20: #{tpu_custom_call.1} parent=5 // pred_fallthru
        _
      %p192 = scmp.le.s32.totalorder 1, %s16
      %p193 = scmp.lt.s32.totalorder %s16, 3
      %p194 = pnand %p192, %p193
      %p195 = pneg %p194
      // Predicated region
      $region29: #{tpu_custom_call.1} parent=5 // pred_check
        _
      $region30: #{tpu_custom_call.1} parent=5 // pred_check_branch
        %197 = sbr.rel (%p194) target = $region32
      $region31: #{tpu_custom_call.1} parent=5 // pred_region
        %s198 = ssub.s32 %s16, 1
        %s199 = sand.u32 %s21, 1
        %s200 = scalar_lea.sflag [#allocation3], %s199
        %s201 = sand.u32 %s29, 1
        %s202 = smul.addr %s201, 16
        %s203 = scalar_lea.vmem [#allocation2], %s202
        // Predicated region
        $region33: #{tpu_custom_call.1} parent=31 // pred_check
          %p204 = pneg %p42
        $region34: #{tpu_custom_call.1} parent=31 // pred_check_branch
          %206 = sbr.rel (%p204) target = $region36
        $region35: #{tpu_custom_call.1} parent=31 // pred_region
          %208 = dma.done %s200, 256
        $region36: #{tpu_custom_call.1} parent=31 // pred_fallthru
          _
        // Predicated region
        $region37: #{tpu_custom_call.1} parent=31 // pred_check
          %p209 = pneg %p63
        $region38: #{tpu_custom_call.1} parent=31 // pred_check_branch
          %211 = sbr.rel (%p209) target = $region40
        $region39: #{tpu_custom_call.1} parent=31 // pred_region
          %213 = dma.done [#allocation6], 512
        $region40: #{tpu_custom_call.1} parent=31 // pred_fallthru
          _
        %s214 = sand.u32 %s21, 1
        %s215 = scalar_lea.sflag [#allocation3], %s214
        %s216 = sand.u32 %s76, 1
        %s217 = smul.addr %s216, 16
        %s218 = scalar_lea.vmem [#allocation7], %s217
        // Predicated region
        $region41: #{tpu_custom_call.1} parent=31 // pred_check
          %p219 = pneg %p89
        $region42: #{tpu_custom_call.1} parent=31 // pred_check_branch
          %221 = sbr.rel (%p219) target = $region44
        $region43: #{tpu_custom_call.1} parent=31 // pred_region
          %223 = dma.done %s215, 256
        $region44: #{tpu_custom_call.1} parent=31 // pred_fallthru
          _
        %s224 = sand.u32 %s21, 1
        %s225 = scalar_lea.sflag [#allocation3], %s224
        %s226 = sand.u32 %s29, 1
        %s227 = smul.addr %s226, 16
        %s228 = scalar_lea.vmem [#allocation2], %s227
        %p229 = pneg %p42
        %p230 = pneg %p39
        %p231 = pneg %p63
        %p232 = pneg %p60
        %s233 = sand.u32 %s21, 1
        %s234 = scalar_lea.sflag [#allocation3], %s233
        %s235 = sand.u32 %s76, 1
        %s236 = smul.addr %s235, 16
        %s237 = scalar_lea.vmem [#allocation7], %s236
        %p238 = pneg %p89
        %p239 = pneg %p86
        %p240 = pneg %p115
        %p241 = pneg %p112
        %s242 = sand.u32 %s102, 1
        %s243 = scalar_lea.sflag [#allocation4], %s242
        %s244 = sand.u32 %s102, 1
        %s245 = smul.addr %s244, 16
        %s246 = scalar_lea.vmem [#allocation8], %s245
        %v247 = vld [vmem:[%s203] sm:$0xff]
        %v248 = vld [vmem:[%s203 + $0x8] sm:$0xff]
        %v249 = vld [vmem:[#allocation5] sm:$0xff]
        %v250 = vld [vmem:[#allocation5 + $0x8] sm:$0xff]
        %v251 = vld [vmem:[#allocation5 + $0x10] sm:$0xff]
        %v252 = vld [vmem:[#allocation5 + $0x18] sm:$0xff]
        %vm253 = vcmask 261120
        %v255 = vsel %vm253, %v247, 0
        %v258 = vsel %vm253, %v248, 0
        %260 = vmatpush.msra.mxu0 0.0
        %261 = vmatpush.msra.mxu0 0.0
        %262 = vmatpush.msra.mxu0 0.0
        %263 = vmatpush.msra.mxu0 0.0
        %264 = vmatpush.msra.mxu0 0.0
        %265 = vmatpush.msra.mxu0 0.0
        %266 = vmatpush.msra.mxu0 0.0
        %267 = vmatpush.msra.mxu0 0.0
        %268 = vmatpush.msra.mxu0 0.0
        %269 = vmatpush.msra.mxu0 0.0
        %270 = vmatpush.msra.mxu0 0.0
        %271 = vmatpush.msra.mxu0 0.0
        %272 = vmatpush.msra.mxu0 %v252
        %273 = vmatpush.msra.mxu0 %v251
        %274 = vmatpush.msra.mxu0 %v250
        %275 = vmatpush.msra.mxu0 %v249
        %276 = vmatmul.f32.gmra.mxu0 %v255
        %v277 = vpop.f32.mrf.mxu0
        %v278 = vadd.f32 0.0, %v277
        %279 = vmatmul.f32.gmra.mxu0 %v258
        %v280 = vpop.f32.mrf.mxu0
        %v281 = vadd.f32 0.0, %v280
        %282 = vdwg.mxu0
        %v283 = vld [vmem:[%s218] sm:$0xff]
        %v284 = vld [vmem:[%s218 + $0x8] sm:$0xff]
        %vm285 = vcmask 130048
        %v287 = vsel %vm285, %v283, 0
        %v290 = vsel %vm285, %v284, 0
        %292 = vmatpush.msra.mxu0 0.0
        %293 = vmatpush.msra.mxu0 0.0
        %294 = vmatpush.msra.mxu0 0.0
        %295 = vmatpush.msra.mxu0 0.0
        %296 = vmatpush.msra.mxu0 0.0
        %297 = vmatpush.msra.mxu0 0.0
        %298 = vmatpush.msra.mxu0 0.0
        %299 = vmatpush.msra.mxu0 0.0
        %300 = vmatpush.msra.mxu0 0.0
        %301 = vmatpush.msra.mxu0 0.0
        %302 = vmatpush.msra.mxu0 0.0
        %303 = vmatpush.msra.mxu0 0.0
        %304 = vmatpush.msra.mxu0 0.0
        %305 = vmatpush.msra.mxu0 0.0
        %306 = vmatpush.msra.mxu0 %v281
        %307 = vmatpush.msra.mxu0 %v278
        %308 = vmatmul.f32.gmra.mxu0 %v287
        %v309 = vpop.f32.mrf.mxu0
        %v310 = vadd.f32 0.0, %v309
        %311 = vmatmul.f32.gmra.mxu0 %v290
        %v312 = vpop.f32.mrf.mxu0
        %v313 = vadd.f32 0.0, %v312
        %314 = vdwg.mxu0
        %vm315 = vcmask 523264
        %316 = vst.msk [vmem:[%s246] sm:$0xff] %vm315, %v310
        %317 = vst.msk [vmem:[%s246 + $0x8] sm:$0xff] %vm315, %v313
        %s318 = sand.u32 %s102, 1
        %s319 = scalar_lea.sflag [#allocation4], %s318
        %s320 = sand.u32 %s102, 1
        %s321 = smul.addr %s320, 16
        %s322 = scalar_lea.vmem [#allocation8], %s321
        // Predicated region
        $region45: #{tpu_custom_call.1} parent=31 // pred_check
          %p323 = pneg %p112
        $region46: #{tpu_custom_call.1} parent=31 // pred_check_branch
          %325 = sbr.rel (%p323) target = $region48
        $region47: #{tpu_custom_call.1} parent=31 // pred_region
          %327 = vsyncadd %s319, 0
          %s328 = smul.addr %s21, 2
          %s329 = smul.addr %s328, 8
          %s330 = scalar_lea.hbm %s3, %s329
          %s331 = sshll.u32 %s322, 4
          %s332 = int_to_ptr.vmem [resolvable:$true] %s331
          %s333 = sshll.u32 %s330, 4
          %s334 = int_to_ptr.hbm [resolvable:$true] %s333
          %339 = dma.vmem_to_hbm [thread:$0]  %s332, 256, %s334, %s319, 128, 128, 8
        $region48: #{tpu_custom_call.1} parent=31 // pred_fallthru
          _
      $region32: #{tpu_custom_call.1} parent=5 // pred_fallthru
        _
      %p340 = scmp.le.s32.totalorder 2, %s16
      // Predicated region
      $region49: #{tpu_custom_call.1} parent=5 // pred_check
        %p341 = pneg %p340
      $region50: #{tpu_custom_call.1} parent=5 // pred_check_branch
        %343 = sbr.rel (%p341) target = $region52
      $region51: #{tpu_custom_call.1} parent=5 // pred_region
        %s344 = ssub.s32 %s16, 2
        // Predicated region
        $region53: #{tpu_custom_call.1} parent=51 // pred_check
          %p345 = pneg %p118
        $region54: #{tpu_custom_call.1} parent=51 // pred_check_branch
          %347 = sbr.rel (%p345) target = $region56
        $region55: #{tpu_custom_call.1} parent=51 // pred_region
          %s348 = sand.u32 %s103, 1
          %s349 = scalar_lea.sflag [#allocation4], %s348
          %s350 = sand.u32 %s103, 1
          %s351 = smul.addr %s350, 16
          %s352 = scalar_lea.vmem [#allocation8], %s351
          %354 = dma.done %s349, 256
        $region56: #{tpu_custom_call.1} parent=51 // pred_fallthru
          _
      $region52: #{tpu_custom_call.1} parent=5 // pred_fallthru
        _
    $region6: #{tpu_custom_call.1} parent=1 // loop_footer
      %s20 = sadd.s32 1, %s16
    $region7: #{tpu_custom_call.1} parent=1 // loop_footer_branch
      %15 = sbr.rel target = $region3
    $region8: #{tpu_custom_call.1} parent=1 // loop_exit
      _
    %355 = vsyncpa [#allocation3], 1
    %s356 = scalar_lea.sflag [#allocation3], 1
    %357 = vsyncpa %s356, 1
    %358 = vsyncpa [#allocation6], 1
    %359 = vsyncpa [#allocation4], 1
    %s360 = scalar_lea.sflag [#allocation4], 1
    %361 = vsyncpa %s360, 1

</llo_original>
